<compile_context>
chip_gen: v6e
topology: v6e:2x2x1
jax: 0.10.0
libtpu: 0.0.40
codegen_flags: <defaults>
</compile_context>

<pallas_src>
import functools
import math

import numpy as np
import jax
import jax.numpy as jnp
from jax import lax
from jax.experimental import pallas as pl
from jax.experimental.pallas import tpu as pltpu

LANE = 128
SUBLANE = 8


def _round_up(x, m):
    return (x + m - 1) // m * m


def _pick_hw_tile(hw):
    """Largest nice spatial tile; prefer >=2 reduction steps to exercise pipelining."""
    for t in (512, 256, 128):
        if hw % t == 0 and hw // t >= 2:
            return t
    for t in (512, 256, 128):
        if hw % t == 0:
            return t
    return hw  # fallback: full-width block (block dim == array dim is always legal)


def _padded_tile_bytes(shape, itemsize=4):
    """Conservative VMEM footprint of one block, padded to the (8,128) vreg tile."""
    shape = tuple(int(s) for s in shape)
    if len(shape) == 1:
        shape = (1,) + shape
    lead = 1
    for s in shape[:-2]:
        lead *= s
    return lead * _round_up(shape[-2], SUBLANE) * _round_up(shape[-1], LANE) * itemsize


# -----------------------------------------------------------------------------
# Fused kernel: 1x1 conv + ReLU + global-average-pool + all ROI heads.
# -----------------------------------------------------------------------------
def fused_kernel(x_ref, cw_ref, cb_ref, wc_ref, bc_ref, o_ref, acc_ref, *, inv_hw):
    """One (batch b, spatial tile t) grid step.

    x_ref:   (1, C, TILE_HW)  image slab — channels on sublanes, space on lanes
    cw_ref:  (D, C)           1x1-conv weight (PyTorch (out, in) layout)
    cb_ref:  (D, 1)           conv bias (column)
    wc_ref:  (D, T_pad)       all ROI-head weights, concatenated + lane-padded
    bc_ref:  (1, T_pad)       all ROI-head biases
    o_ref:   (1, 1, T_pad)    per-batch output row (lane-dense)
    acc_ref: (D, 1)           f32 running pooled-sum of relu(conv(x))
    """
    t = pl.program_id(1)

    @pl.when(t == 0)
    def _init():
        acc_ref[...] = jnp.zeros_like(acc_ref)

    x = x_ref[0]                                                        # (C, TILE_HW)
    h = jnp.dot(cw_ref[...], x, preferred_element_type=jnp.float32)    # (D, TILE_HW)
    relu = jnp.maximum(h + cb_ref[...], 0.0)                           # VPU
    acc_ref[...] += jnp.sum(relu, axis=1, keepdims=True)               # XLU lane-reduce

    @pl.when(t == pl.num_programs(1) - 1)
    def _epilogue():
        # Global average pool -> (D, 1).
        feat = acc_ref[...] * inv_hw
        # All ROI heads at once: contract D (dim 0 of both) -> (1, T_pad).
        out = lax.dot_general(
            feat, wc_ref[...],
            dimension_numbers=(((0,), (0,)), ((), ())),
            preferred_element_type=jnp.float32)
        o_ref[0] = (out + bc_ref[...]).astype(o_ref.dtype)


def fused_forward(x_bcn, conv_w, conv_b, w_cat_pad, b_cat_pad):
    """x_bcn: (B, C, HW) f32 -> (B, T_pad) f32."""
    bsz, cin, hw = x_bcn.shape
    d = conv_w.shape[0]
    t_pad = w_cat_pad.shape[1]
    tile_hw = _pick_hw_tile(hw)
    n_hw = hw // tile_hw

    cb2 = conv_b.reshape(d, 1)
    bc2 = b_cat_pad.reshape(1, t_pad)

    # Scoped-VMEM budget from the chosen tiles (double-buffered blocks + scratch).
    est = (2 * (_padded_tile_bytes((1, cin, tile_hw))
                + _padded_tile_bytes((d, cin))
                + _padded_tile_bytes((d, 1))
                + _padded_tile_bytes((d, t_pad))
                + _padded_tile_bytes((1, t_pad))
                + _padded_tile_bytes((1, 1, t_pad)))
           + _padded_tile_bytes((d, 1)))
    vmem_limit = int(min(max(4 * est, 16 * 2 ** 20), 64 * 2 ** 20))

    kernel = functools.partial(fused_kernel, inv_hw=1.0 / float(hw))

    out = pl.pallas_call(
        kernel,
        out_shape=jax.ShapeDtypeStruct((bsz, 1, t_pad), jnp.float32),
        grid_spec=pltpu.PrefetchScalarGridSpec(
            num_scalar_prefetch=0,
            grid=(bsz, n_hw),
            in_specs=[
                pl.BlockSpec((1, cin, tile_hw), lambda b, t: (b, 0, t)),
                pl.BlockSpec((d, cin), lambda b, t: (0, 0)),
                pl.BlockSpec((d, 1), lambda b, t: (0, 0)),
                pl.BlockSpec((d, t_pad), lambda b, t: (0, 0)),
                pl.BlockSpec((1, t_pad), lambda b, t: (0, 0)),
            ],
            out_specs=pl.BlockSpec((1, 1, t_pad), lambda b, t: (b, 0, 0)),
            scratch_shapes=[pltpu.VMEM((d, 1), jnp.float32)],
        ),
        compiler_params=pltpu.CompilerParams(
            dimension_semantics=("parallel", "arbitrary"),
            vmem_limit_bytes=vmem_limit,
        ),
    )(x_bcn, conv_w, cb2, w_cat_pad, bc2)
    return out.reshape(bsz, t_pad)


# -----------------------------------------------------------------------------
# Parameter init (mirrors nn.Linear default U(-1/sqrt(fan_in), +1/sqrt(fan_in)))
# -----------------------------------------------------------------------------
def linear_init(key, fan_in, fan_out):
    k1, k2 = jax.random.split(key)
    bound = 1.0 / math.sqrt(fan_in)
    w = jax.random.uniform(k1, (fan_in, fan_out), jnp.float32, -bound, bound)
    b = jax.random.uniform(k2, (fan_out,), jnp.float32, -bound, bound)
    return w, b


# -----------------------------------------------------------------------------
# Model
# -----------------------------------------------------------------------------
class AlgonautsTimmPallas:
    SIDES = ('l', 'r')

    def __init__(self, subject_metadata, in_channels, embed_dim, key):
        keys = iter(jax.random.split(key, 64))
        self.embed_dim = embed_dim
        self.subject_metadata = subject_metadata

        # Backbone stand-in parameters (see TODO(synk) at top of file).
        w, b = linear_init(next(keys), in_channels, embed_dim)
        self.conv_w = w.T            # (D, C) — same (out, in) layout as PyTorch
        self.conv_b = b              # (D,)

        # Bank of ROI heads, concatenated along output columns, stored as (D, T).
        self.head_slices = {}
        ws, bs_ = [], []
        off = 0
        for side in self.SIDES:
            roi_index = None
            for roi_name, roi_index in subject_metadata[side].items():
                roi_size = int(np.sum(roi_index))
                if roi_size > 0:
                    hw_, hb_ = linear_init(next(keys), embed_dim, roi_size)
                    ws.append(hw_)
                    bs_.append(hb_)
                    self.head_slices[(side, roi_name)] = (off, off + roi_size)
                    off += roi_size
            # NOTE: mirrors the PyTorch module — the '_all' head is sized from the
            # last roi_index seen on this side (requires >= 1 ROI per side).
            n_all = int(np.asarray(roi_index).shape[0])
            hw_, hb_ = linear_init(next(keys), embed_dim, n_all)
            ws.append(hw_)
            bs_.append(hb_)
            self.head_slices[(side + '_all', None)] = (off, off + n_all)
            off += n_all

        self.total_out = off
        self.w_cat = jnp.concatenate(ws, axis=1)    # (D, T)
        self.b_cat = jnp.concatenate(bs_, axis=0)   # (T,)

        # Lane-dense padding of the head bank: T -> multiple of 128.
        t_pad = _round_up(self.total_out, LANE)
        self.t_pad = t_pad
        self.w_cat_pad = jnp.zeros((embed_dim, t_pad), jnp.float32).at[:, :off].set(self.w_cat)
        self.b_cat_pad = jnp.zeros((t_pad,), jnp.float32).at[:off].set(self.b_cat)

    # ---- Pallas forward ----------------------------------------------------
    def forward(self, batch):
        image = batch['image']                      # (B, C, H, W), PyTorch NCHW
        bsz, c, h, w = image.shape
        x = image.reshape(bsz, c, h * w)            # free reshape, no transpose
        out_pad = fused_forward(x, self.conv_w, self.conv_b,
                                self.w_cat_pad, self.b_cat_pad)
        out = out_pad[:, :self.total_out]           # strip lane padding
        return self._split_rois(out)

    # ---- Pure-JAX reference (same math, no Pallas) ---------------------------
    def reference_forward(self, batch):
        image = batch['image']
        bsz, c, h, w = image.shape
        x = image.reshape(bsz, c, h * w).astype(jnp.float32)
        hidden = jnp.maximum(
            jnp.einsum('dc,bcn->bdn', self.conv_w, x) + self.conv_b[None, :, None], 0.0)
        feats = jnp.mean(hidden, axis=-1)           # (B, D)
        out = feats @ self.w_cat + self.b_cat       # (B, T)
        return self._split_rois(out)

    # ---- common ROI slicing --------------------------------------------------
    def _split_rois(self, out):
        output_dict = {}
        for side in self.SIDES:
            output_dict[side] = {}
            for roi_name in self.subject_metadata[side]:
                k = (side, roi_name)
                if k in self.head_slices:
                    s, e = self.head_slices[k]
                    output_dict[side][roi_name] = out[:, s:e]
            s, e = self.head_slices[(side + '_all', None)]
            output_dict[side + '_all'] = out[:, s:e]
        return output_dict


# -----------------------------------------------------------------------------
# Main
# -----------------------------------------------------------------------------
if __name__ == "__main__":
    key = jax.random.PRNGKey(0)
    k_img, k_params = jax.random.split(key)

    # Synthetic subject metadata: boolean ROI masks over `num_vertices` vertices.
    num_vertices = 20
    rng = np.random.RandomState(0)

    def make_mask(n_true):
        m = np.zeros(num_vertices, dtype=np.int64)
        m[:n_true] = 1
        return rng.permutation(m)

    subject_metadata = {
        'l': {'V1': make_mask(5), 'V2': make_mask(7), 'empty': make_mask(0)},
        'r': {'V1': make_mask(4), 'V2': make_mask(6)},
    }

    model = AlgonautsTimmPallas(subject_metadata, in_channels=4,
                                embed_dim=32, key=k_params)

    image = jax.random.normal(k_img, (2, 4, 16, 16), dtype=jnp.float32)
    batch = {'image': image}

    out = model.forward(batch)
    out = jax.tree_util.tree_map(jax.block_until_ready, out)

    # Correctness check against the pure-JAX reference.
    ref = model.reference_forward(batch)
    out_leaves, out_tree = jax.tree_util.tree_flatten(out)
    ref_leaves, ref_tree = jax.tree_util.tree_flatten(ref)
    assert out_tree == ref_tree
    for a, b in zip(out_leaves, ref_leaves):
        assert a.shape == b.shape
        np.testing.assert_allclose(np.asarray(a), np.asarray(b),
                                   rtol=1e-5, atol=1e-5)

    print("KERNEL_OK")
</pallas_src>

<mosaic_0001>
module attributes {stable_mosaic.version = 11 : i64} {
  func.func @fused_kernel(%arg0: i32, %arg1: i32, %arg2: memref<1x4x128xf32, #tpu.memory_space<vmem>>, %arg3: memref<32x4xf32, #tpu.memory_space<vmem>>, %arg4: memref<32x1xf32, #tpu.memory_space<vmem>>, %arg5: memref<32x128xf32, #tpu.memory_space<vmem>>, %arg6: memref<1x128xf32, #tpu.memory_space<vmem>>, %arg7: memref<1x1x128xf32, #tpu.memory_space<vmem>>, %arg8: memref<32x1xf32, #tpu.memory_space<vmem>>) attributes {dimension_semantics = [#tpu.dimension_semantics<parallel>, #tpu.dimension_semantics<arbitrary>], iteration_bounds = array<i64: 2, 2>, scalar_prefetch = 0 : i64, scratch_operands = 1 : i64, tpu.core_type = #tpu.core_type<tc>, window_params = [{transform_indices = @transform_0, window_bounds = array<i64: 1, 4, 128>}, {pipeline_mode = #tpu.pipeline_mode<synchronous>, transform_indices = @transform_1, window_bounds = array<i64: 32, 4>}, {pipeline_mode = #tpu.pipeline_mode<synchronous>, transform_indices = @transform_2, window_bounds = array<i64: 32, 1>}, {pipeline_mode = #tpu.pipeline_mode<synchronous>, transform_indices = @transform_3, window_bounds = array<i64: 32, 128>}, {pipeline_mode = #tpu.pipeline_mode<synchronous>, transform_indices = @transform_4, window_bounds = array<i64: 1, 128>}, {transform_indices = @transform_5, window_bounds = array<i64: 1, 1, 128>}]} {
    %c0_i32 = arith.constant 0 : i32
    %0 = arith.cmpi eq, %arg1, %c0_i32 : i32
    %1 = arith.extui %0 : i1 to i32
    %c0_i32_0 = arith.constant 0 : i32
    %2 = arith.cmpi ne, %1, %c0_i32_0 : i32
    scf.if %2 {
      %cst_14 = arith.constant 0.000000e+00 : f32
      %20 = vector.broadcast %cst_14 : f32 to vector<32x1xf32>
      %c0_15 = arith.constant 0 : index
      %c0_16 = arith.constant 0 : index
      %21 = vector.load %arg8[%c0_15, %c0_16] : memref<32x1xf32, #tpu.memory_space<vmem>>, vector<32x1xf32>
      tpu.vector_store %arg8[%c0_15, %c0_16], %20 {strides = array<i32>} : memref<32x1xf32, #tpu.memory_space<vmem>>, vector<32x1xf32>,
    } else {
    }
    %c0 = arith.constant 0 : index
    %c0_1 = arith.constant 0 : index
    %c0_2 = arith.constant 0 : index
    %3 = vector.load %arg2[%c0, %c0_1, %c0_2] : memref<1x4x128xf32, #tpu.memory_space<vmem>>, vector<1x4x128xf32>
    %4 = vector.shape_cast %3 : vector<1x4x128xf32> to vector<4x128xf32>
    %c0_3 = arith.constant 0 : index
    %c0_4 = arith.constant 0 : index
    %5 = vector.load %arg3[%c0_3, %c0_4] : memref<32x4xf32, #tpu.memory_space<vmem>>, vector<32x4xf32>
    %cst = arith.constant dense<0.000000e+00> : vector<32x128xf32>
    %6 = tpu.matmul %5, %4, %cst {dimension_numbers = #tpu.dot_dimension_numbers<[1], [0], [0], [1], [0, 0, 1, 1], [], []>} : vector<32x4xf32>, vector<4x128xf32>, vector<32x128xf32> -> vector<32x128xf32>
    %c0_5 = arith.constant 0 : index
    %c0_6 = arith.constant 0 : index
    %7 = vector.load %arg4[%c0_5, %c0_6] : memref<32x1xf32, #tpu.memory_space<vmem>>, vector<32x1xf32>
    %8 = vector.broadcast %7 : vector<32x1xf32> to vector<32x128xf32>
    %9 = arith.addf %6, %8 : vector<32x128xf32>
    %cst_7 = arith.constant 0.000000e+00 : f32
    %10 = vector.broadcast %cst_7 : f32 to vector<32x128xf32>
    %11 = arith.maximumf %9, %10 : vector<32x128xf32>
    %c0_8 = arith.constant 0 : index
    %c0_9 = arith.constant 0 : index
    %12 = vector.load %arg8[%c0_8, %c0_9] : memref<32x1xf32, #tpu.memory_space<vmem>>, vector<32x1xf32>
    %cst_10 = arith.constant dense<0.000000e+00> : vector<32xf32>
    %13 = vector.multi_reduction <add>, %11, %cst_10 [1] : vector<32x128xf32> to vector<32xf32>
    %14 = vector.shape_cast %13 : vector<32xf32> to vector<32x1xf32>
    %15 = arith.addf %12, %14 : vector<32x1xf32>
    %c0_11 = arith.constant 0 : index
    %c0_12 = arith.constant 0 : index
    %16 = vector.load %arg8[%c0_11, %c0_12] : memref<32x1xf32, #tpu.memory_space<vmem>>, vector<32x1xf32>
    tpu.vector_store %arg8[%c0_11, %c0_12], %15 {strides = array<i32>} : memref<32x1xf32, #tpu.memory_space<vmem>>, vector<32x1xf32>,
    %c1_i32 = arith.constant 1 : i32
    %17 = arith.cmpi eq, %arg1, %c1_i32 : i32
    %18 = arith.extui %17 : i1 to i32
    %c0_i32_13 = arith.constant 0 : i32
    %19 = arith.cmpi ne, %18, %c0_i32_13 : i32
    scf.if %19 {
      %c0_14 = arith.constant 0 : index
      %c0_15 = arith.constant 0 : index
      %20 = vector.load %arg8[%c0_14, %c0_15] : memref<32x1xf32, #tpu.memory_space<vmem>>, vector<32x1xf32>
      %cst_16 = arith.constant 3.906250e-03 : f32
      %21 = vector.broadcast %cst_16 : f32 to vector<32x1xf32>
      %22 = arith.mulf %20, %21 : vector<32x1xf32>
      %c0_17 = arith.constant 0 : index
      %c0_18 = arith.constant 0 : index
      %23 = vector.load %arg5[%c0_17, %c0_18] : memref<32x128xf32, #tpu.memory_space<vmem>>, vector<32x128xf32>
      %cst_19 = arith.constant dense<0.000000e+00> : vector<1x128xf32>
      %24 = tpu.matmul %22, %23, %cst_19 {dimension_numbers = #tpu.dot_dimension_numbers<[0], [0], [1], [1], [0, 1, 1, 1], [], []>} : vector<32x1xf32>, vector<32x128xf32>, vector<1x128xf32> -> vector<1x128xf32>
      %c0_20 = arith.constant 0 : index
      %c0_21 = arith.constant 0 : index
      %25 = vector.load %arg6[%c0_20, %c0_21] : memref<1x128xf32, #tpu.memory_space<vmem>>, vector<1x128xf32>
      %26 = arith.addf %24, %25 : vector<1x128xf32>
      %c0_22 = arith.constant 0 : index
      %c0_23 = arith.constant 0 : index
      %c0_24 = arith.constant 0 : index
      %27 = vector.load %arg7[%c0_22, %c0_23, %c0_24] : memref<1x1x128xf32, #tpu.memory_space<vmem>>, vector<1x1x128xf32>
      %28 = vector.shape_cast %27 : vector<1x1x128xf32> to vector<1x128xf32>
      %29 = vector.shape_cast %26 : vector<1x128xf32> to vector<1x1x128xf32>
      tpu.vector_store %arg7[%c0_22, %c0_23, %c0_24], %29 {strides = array<i32>} : memref<1x1x128xf32, #tpu.memory_space<vmem>>, vector<1x1x128xf32>,
    } else {
    }
    return
  }
  func.func @transform_0(%arg0: i32, %arg1: i32) -> (i32, i32, i32) {
    %c0_i32 = arith.constant 0 : i32
    %c0_i32_0 = arith.constant 0 : i32
    return %arg0, %c0_i32, %arg1 : i32, i32, i32
  }
  func.func @transform_1(%arg0: i32, %arg1: i32) -> (i32, i32) {
    %c0_i32 = arith.constant 0 : i32
    %c0_i32_0 = arith.constant 0 : i32
    %c0_i32_1 = arith.constant 0 : i32
    return %c0_i32, %c0_i32_0 : i32, i32
  }
  func.func @transform_2(%arg0: i32, %arg1: i32) -> (i32, i32) {
    %c0_i32 = arith.constant 0 : i32
    %c0_i32_0 = arith.constant 0 : i32
    %c0_i32_1 = arith.constant 0 : i32
    return %c0_i32, %c0_i32_0 : i32, i32
  }
  func.func @transform_3(%arg0: i32, %arg1: i32) -> (i32, i32) {
    %c0_i32 = arith.constant 0 : i32
    %c0_i32_0 = arith.constant 0 : i32
    %c0_i32_1 = arith.constant 0 : i32
    return %c0_i32, %c0_i32_0 : i32, i32
  }
  func.func @transform_4(%arg0: i32, %arg1: i32) -> (i32, i32) {
    %c0_i32 = arith.constant 0 : i32
    %c0_i32_0 = arith.constant 0 : i32
    %c0_i32_1 = arith.constant 0 : i32
    return %c0_i32, %c0_i32_0 : i32, i32
  }
  func.func @transform_5(%arg0: i32, %arg1: i32) -> (i32, i32, i32) {
    %c0_i32 = arith.constant 0 : i32
    %c0_i32_0 = arith.constant 0 : i32
    %c0_i32_1 = arith.constant 0 : i32
    return %arg0, %c0_i32, %c0_i32_0 : i32, i32, i32
  }
}

</mosaic_0001>

<llo_original>
// kernel: tpu_custom_call.1
$region0: #{tpu_custom_call.1}
  #allocation0 [shape = 'u32[]', space=smem, size = 0x4, offset = 0x4, fixed_abs, tag = 'smem constant byte address 0x4 - core index']
  #allocation1 [shape = 'u32[144,128]{1,0:T(1,128)}', space=vmem, size = 0x12000, scoped, tag = 'internal scratch']
  #allocation2 [shape = 'f32[32,1]{1,0:T(8,128)}', space=vmem, size = 0x4000, scoped, tag = 'scratch operand']
  %s0 = inlined_call_operand.vmem [shape: f32[2,4,256], index: 0, kind: input, shape index: {}]
  %s1 = inlined_call_operand.vmem [shape: f32[32,4], index: 1, kind: input, shape index: {}]
  %s2 = inlined_call_operand.vmem [shape: f32[32,1], index: 2, kind: input, shape index: {}]
  %s3 = inlined_call_operand.vmem [shape: f32[32,128], index: 3, kind: input, shape index: {}]
  %s4 = inlined_call_operand.vmem [shape: f32[1,128], index: 4, kind: input, shape index: {}]
  %s5 = inlined_call_operand.hbm [shape: f32[2,1,128], index: 5, kind: output, shape index: {}]
  %s6 = sld [smem:[#allocation0]]
  $region61: #{tpu_custom_call.1} parent=0
    _
  %s8 = ssub.s32 1, %s6
  %s9 = scalar_select 0, %s8, %s6
  $region1: #{tpu_custom_call.1} parent=0
    #allocation3 [shape = 'u8[1024]{0}', space=vmem, size = 0x400, scoped, tag = 'output window, operand 0']
    #allocation4 [shape = 's32[2]{0}', space=sflag, size = 0x8, scoped, tag = 'scoped memory for tpu_custom_call.1']
    %10 = vsyncpa [#allocation4], 0
    %s11 = scalar_lea.sflag [#allocation4], 1
    %12 = vsyncpa %s11, 0
    loop: start=0, step=1, limit=6
    $region2: #{tpu_custom_call.1} parent=1 // loop_pre_header
      _
    $region3: #{tpu_custom_call.1} parent=1 // loop_header
      %s14 = sphi 0, %s18
      %p15 = scmp.ge.s32.totalorder %s14, 6
      %s21 = sphi 0, %s33
      %s22 = sphi 0, %s29
      %s23 = sphi 0, %s21
      %s24 = sphi 0, %s22
      %s25 = sphi 0, %s23
      %s26 = sphi 0, %s24
      %s38 = sphi 0, %s40
      %s41 = sphi 0, %s38
      %s42 = sphi 0, %s41
      %s58 = sphi 0, %s42
      %s62 = sphi 0, %s62
      %s64 = sphi 0, %s62
      %s65 = sphi 0, %s64
      %s79 = sphi 0, %s65
      %s83 = sphi 0, %s83
      %s85 = sphi 0, %s83
      %s86 = sphi 0, %s85
      %s100 = sphi 0, %s86
      %s104 = sphi 0, %s104
      %s106 = sphi 0, %s104
      %s107 = sphi 0, %s106
      %s121 = sphi 0, %s107
      %s125 = sphi 0, %s125
      %s127 = sphi 0, %s125
      %s128 = sphi 0, %s127
      %s142 = sphi 0, %s128
      %s148 = sphi 0, %s150
      %s151 = sphi 0, %s148
      %s152 = sphi 0, %s151
      %s168 = sphi 0, %s152
    $region4: #{tpu_custom_call.1} parent=1 // loop_header_branch
      %17 = sbr.rel (%p15) target = $region8
    $region5: #{tpu_custom_call.1} parent=1 // loop_body
      %s19 = ssub.s32 %s14, 1
      %s20 = ssub.s32 %s14, 2
      %s27 = sadd.s32 1, %s22
      %p28 = scmp.ge.s32.totalorder %s27, 2
      %s29 = scalar_select %p28, 0, %s27
      %s30 = sadd.s32 1, %s21
      %s31 = scalar_select %p28, %s30, %s21
      %p32 = scmp.ge.s32.totalorder %s31, 2
      %s33 = scalar_select %p32, 0, %s31
      %s34 = ssub.s32 %s21, %s33
      %s35 = ssub.s32 %s22, %s29
      %s36 = sor.u32 %s34, %s35
      %p37 = scmp.eq.s32.totalorder %s36, 0
      %s39 = sadd.s32 %s38, 1
      %s40 = scalar_select %p37, %s38, %s39
      %p43 = pneg %p37
      %p44 = scmp.eq.s32.totalorder %s14, 3
      %p45 = por %p43, %p44
      %p46 = scmp.ne.s32.totalorder %s38, %s41
      %p47 = scmp.eq.s32.totalorder %s14, 0
      %p48 = por %p46, %p47
      %p49 = scmp.ne.s32.totalorder %s38, %s41
      %p50 = scmp.eq.s32.totalorder %s19, 3
      %p51 = por %p49, %p50
      %p52 = scmp.ne.s32.totalorder %s41, %s42
      %p53 = scmp.eq.s32.totalorder %s19, 0
      %p54 = por %p52, %p53
      %p55 = scmp.ne.s32.totalorder %s41, %s42
      %p56 = scmp.eq.s32.totalorder %s20, 3
      %p57 = por %p55, %p56
      %p59 = scmp.ne.s32.totalorder %s42, %s58
      %p60 = scmp.eq.s32.totalorder %s20, 0
      %p61 = por %p59, %p60
      %s63 = sadd.s32 %s62, 1
      %p66 = scmp.eq.s32.totalorder %s14, 3
      %p67 = scmp.ne.s32.totalorder %s62, %s64
      %p68 = scmp.eq.s32.totalorder %s14, 0
      %p69 = por %p67, %p68
      %p70 = scmp.ne.s32.totalorder %s62, %s64
      %p71 = scmp.eq.s32.totalorder %s19, 3
      %p72 = por %p70, %p71
      %p73 = scmp.ne.s32.totalorder %s64, %s65
      %p74 = scmp.eq.s32.totalorder %s19, 0
      %p75 = por %p73, %p74
      %p76 = scmp.ne.s32.totalorder %s64, %s65
      %p77 = scmp.eq.s32.totalorder %s20, 3
      %p78 = por %p76, %p77
      %p80 = scmp.ne.s32.totalorder %s65, %s79
      %p81 = scmp.eq.s32.totalorder %s20, 0
      %p82 = por %p80, %p81
      %s84 = sadd.s32 %s83, 1
      %p87 = scmp.eq.s32.totalorder %s14, 3
      %p88 = scmp.ne.s32.totalorder %s83, %s85
      %p89 = scmp.eq.s32.totalorder %s14, 0
      %p90 = por %p88, %p89
      %p91 = scmp.ne.s32.totalorder %s83, %s85
      %p92 = scmp.eq.s32.totalorder %s19, 3
      %p93 = por %p91, %p92
      %p94 = scmp.ne.s32.totalorder %s85, %s86
      %p95 = scmp.eq.s32.totalorder %s19, 0
      %p96 = por %p94, %p95
      %p97 = scmp.ne.s32.totalorder %s85, %s86
      %p98 = scmp.eq.s32.totalorder %s20, 3
      %p99 = por %p97, %p98
      %p101 = scmp.ne.s32.totalorder %s86, %s100
      %p102 = scmp.eq.s32.totalorder %s20, 0
      %p103 = por %p101, %p102
      %s105 = sadd.s32 %s104, 1
      %p108 = scmp.eq.s32.totalorder %s14, 3
      %p109 = scmp.ne.s32.totalorder %s104, %s106
      %p110 = scmp.eq.s32.totalorder %s14, 0
      %p111 = por %p109, %p110
      %p112 = scmp.ne.s32.totalorder %s104, %s106
      %p113 = scmp.eq.s32.totalorder %s19, 3
      %p114 = por %p112, %p113
      %p115 = scmp.ne.s32.totalorder %s106, %s107
      %p116 = scmp.eq.s32.totalorder %s19, 0
      %p117 = por %p115, %p116
      %p118 = scmp.ne.s32.totalorder %s106, %s107
      %p119 = scmp.eq.s32.totalorder %s20, 3
      %p120 = por %p118, %p119
      %p122 = scmp.ne.s32.totalorder %s107, %s121
      %p123 = scmp.eq.s32.totalorder %s20, 0
      %p124 = por %p122, %p123
      %s126 = sadd.s32 %s125, 1
      %p129 = scmp.eq.s32.totalorder %s14, 3
      %p130 = scmp.ne.s32.totalorder %s125, %s127
      %p131 = scmp.eq.s32.totalorder %s14, 0
      %p132 = por %p130, %p131
      %p133 = scmp.ne.s32.totalorder %s125, %s127
      %p134 = scmp.eq.s32.totalorder %s19, 3
      %p135 = por %p133, %p134
      %p136 = scmp.ne.s32.totalorder %s127, %s128
      %p137 = scmp.eq.s32.totalorder %s19, 0
      %p138 = por %p136, %p137
      %p139 = scmp.ne.s32.totalorder %s127, %s128
      %p140 = scmp.eq.s32.totalorder %s20, 3
      %p141 = por %p139, %p140
      %p143 = scmp.ne.s32.totalorder %s128, %s142
      %p144 = scmp.eq.s32.totalorder %s20, 0
      %p145 = por %p143, %p144
      %s146 = ssub.s32 %s21, %s33
      %p147 = scmp.eq.s32.totalorder %s146, 0
      %s149 = sadd.s32 %s148, 1
      %s150 = scalar_select %p147, %s148, %s149
      %p153 = pneg %p147
      %p154 = scmp.eq.s32.totalorder %s14, 3
      %p155 = por %p153, %p154
      %p156 = scmp.ne.s32.totalorder %s148, %s151
      %p157 = scmp.eq.s32.totalorder %s14, 0
      %p158 = por %p156, %p157
      %p159 = scmp.ne.s32.totalorder %s148, %s151
      %p160 = scmp.eq.s32.totalorder %s19, 3
      %p161 = por %p159, %p160
      %p162 = scmp.ne.s32.totalorder %s151, %s152
      %p163 = scmp.eq.s32.totalorder %s19, 0
      %p164 = por %p162, %p163
      %p165 = scmp.ne.s32.totalorder %s151, %s152
      %p166 = scmp.eq.s32.totalorder %s20, 3
      %p167 = por %p165, %p166
      %p169 = scmp.ne.s32.totalorder %s152, %s168
      %p170 = scmp.eq.s32.totalorder %s20, 0
      %p171 = por %p169, %p170
      %p172 = scmp.le.s32.totalorder 1, %s14
      %p173 = scmp.lt.s32.totalorder %s14, 5
      %p174 = pnand %p172, %p173
      %p175 = pneg %p174
      // Predicated region
      $region9: #{tpu_custom_call.1} parent=5 // pred_check
        _
      $region10: #{tpu_custom_call.1} parent=5 // pred_check_branch
        %177 = sbr.rel (%p174) target = $region12
      $region11: #{tpu_custom_call.1} parent=5 // pred_region
        %s178 = ssub.s32 %s14, 1
        // Predicated region
        $region13: #{tpu_custom_call.1} parent=11 // pred_check
          %p179 = pneg %p75
        $region14: #{tpu_custom_call.1} parent=11 // pred_check_branch
          %181 = sbr.rel (%p179) target = $region16
        $region15: #{tpu_custom_call.1} parent=11 // pred_region
          _
        $region16: #{tpu_custom_call.1} parent=11 // pred_fallthru
          _
        // Predicated region
        $region17: #{tpu_custom_call.1} parent=11 // pred_check
          %p182 = pneg %p96
        $region18: #{tpu_custom_call.1} parent=11 // pred_check_branch
          %184 = sbr.rel (%p182) target = $region20
        $region19: #{tpu_custom_call.1} parent=11 // pred_region
          _
        $region20: #{tpu_custom_call.1} parent=11 // pred_fallthru
          _
        // Predicated region
        $region21: #{tpu_custom_call.1} parent=11 // pred_check
          %p185 = pneg %p117
        $region22: #{tpu_custom_call.1} parent=11 // pred_check_branch
          %187 = sbr.rel (%p185) target = $region24
        $region23: #{tpu_custom_call.1} parent=11 // pred_region
          _
        $region24: #{tpu_custom_call.1} parent=11 // pred_fallthru
          _
        // Predicated region
        $region25: #{tpu_custom_call.1} parent=11 // pred_check
          %p188 = pneg %p138
        $region26: #{tpu_custom_call.1} parent=11 // pred_check_branch
          %190 = sbr.rel (%p188) target = $region28
        $region27: #{tpu_custom_call.1} parent=11 // pred_region
          _
        $region28: #{tpu_custom_call.1} parent=11 // pred_fallthru
          _
      $region12: #{tpu_custom_call.1} parent=5 // pred_fallthru
        _
      %p191 = scmp.lt.s32.totalorder %s14, 4
      // Predicated region
      $region29: #{tpu_custom_call.1} parent=5 // pred_check
        %p192 = pneg %p191
      $region30: #{tpu_custom_call.1} parent=5 // pred_check_branch
        %194 = sbr.rel (%p192) target = $region32
      $region31: #{tpu_custom_call.1} parent=5 // pred_region
        // Predicated region
        $region33: #{tpu_custom_call.1} parent=31 // pred_check
          %p195 = pneg %p48
        $region34: #{tpu_custom_call.1} parent=31 // pred_check_branch
          %197 = sbr.rel (%p195) target = $region36
        $region35: #{tpu_custom_call.1} parent=31 // pred_region
          %p198 = scmp.lt.s32.totalorder %s21, 1
          %s199 = scalar_select %p198, %s21, 1
          %p200 = scmp.lt.s32.totalorder %s22, 1
          %s201 = scalar_select %p200, %s22, 1
          %s202 = smul.addr %s199, 2
          %s203 = sadd.s32 %s201, %s202
          %s204 = smul.addr %s203, 4
          %s205 = scalar_lea.vmem %s0, %s204
        $region36: #{tpu_custom_call.1} parent=31 // pred_fallthru
          _
      $region32: #{tpu_custom_call.1} parent=5 // pred_fallthru
        _
      %p206 = scmp.le.s32.totalorder 1, %s14
      %p207 = scmp.lt.s32.totalorder %s14, 5
      %p208 = pnand %p206, %p207
      %p209 = pneg %p208
      // Predicated region
      $region37: #{tpu_custom_call.1} parent=5 // pred_check
        _
      $region38: #{tpu_custom_call.1} parent=5 // pred_check_branch
        %211 = sbr.rel (%p208) target = $region40
      $region39: #{tpu_custom_call.1} parent=5 // pred_region
        %s212 = ssub.s32 %s14, 1
        %p213 = scmp.lt.s32.totalorder %s23, 1
        %s214 = scalar_select %p213, %s23, 1
        %p215 = scmp.lt.s32.totalorder %s24, 1
        %s216 = scalar_select %p215, %s24, 1
        %s217 = smul.addr %s214, 2
        %s218 = sadd.s32 %s216, %s217
        %s219 = smul.addr %s218, 4
        %s220 = scalar_lea.vmem %s0, %s219
        %p221 = pneg %p54
        %p222 = pneg %p51
        %p223 = pneg %p75
        %p224 = pneg %p72
        %p225 = pneg %p96
        %p226 = pneg %p93
        %p227 = pneg %p117
        %p228 = pneg %p114
        %p229 = pneg %p138
        %p230 = pneg %p135
        %p231 = pneg %p164
        %p232 = pneg %p161
        %s233 = sand.u32 %s151, 1
        %s234 = scalar_lea.sflag [#allocation4], %s233
        %s235 = sand.u32 %s151, 1
        %s236 = scalar_lea.vmem [#allocation3], %s235
        %p237 = scmp.lt.s32.totalorder %s23, 1
        %s238 = scalar_select %p237, %s23, 1
        %p239 = scmp.lt.s32.totalorder %s24, 1
        %s240 = scalar_select %p239, %s24, 1
        %s241 = smul.addr %s238, 2
        %s242 = sadd.s32 %s240, %s241
        %s243 = smul.addr %s242, 4
        %s244 = scalar_lea.vmem %s0, %s243
        %p245 = scmp.eq.s32.totalorder %s24, 0
        // Predicated region
        $region41: #{tpu_custom_call.1} parent=39 // pred_check
          %p246 = pneg %p245
        $region42: #{tpu_custom_call.1} parent=39 // pred_check_branch
          %248 = sbr.rel (%p246) target = $region44
        $region43: #{tpu_custom_call.1} parent=39 // pred_region
          %vm249 = vcmask 7168
          %250 = vst.msk [vmem:[#allocation2] sm:$0xff] %vm249, 0.0
          %251 = vst.msk [vmem:[#allocation2 + $0x8] sm:$0xff] %vm249, 0.0
          %252 = vst.msk [vmem:[#allocation2 + $0x10] sm:$0xff] %vm249, 0.0
          %253 = vst.msk [vmem:[#allocation2 + $0x18] sm:$0xff] %vm249, 0.0
        $region44: #{tpu_custom_call.1} parent=39 // pred_fallthru
          _
        %v254 = vld [vmem:[%s244] sm:$0xf]
        %v255 = vld [vmem:[%s1] sm:$0xff]
        %v256 = vld [vmem:[%s1 + $0x8] sm:$0xff]
        %v257 = vld [vmem:[%s1 + $0x10] sm:$0xff]
        %v258 = vld [vmem:[%s1 + $0x18] sm:$0xff]
        %v259 = vld [vmem:[%s2] sm:$0xff]
        %v260 = vld [vmem:[%s2 + $0x8] sm:$0xff]
        %v261 = vld [vmem:[%s2 + $0x10] sm:$0xff]
        %v262 = vld [vmem:[%s2 + $0x18] sm:$0xff]
        %264 = vset.pattern.permute.xlu0 0
        %265 = vperm.xlu0 %264, %v259
        %v266 = vpop.permute.xlu0 %265
        %269 = vset.pattern.permute.xlu0 0
        %270 = vperm.xlu0 %269, %v260
        %v271 = vpop.permute.xlu0 %270
        %274 = vset.pattern.permute.xlu0 0
        %275 = vperm.xlu0 %274, %v261
        %v276 = vpop.permute.xlu0 %275
        %279 = vset.pattern.permute.xlu0 0
        %280 = vperm.xlu0 %279, %v262
        %v281 = vpop.permute.xlu0 %280
        %vm283 = vcmask 31744
        %v285 = vsel %vm283, %v255, 0
        %v288 = vsel %vm283, %v256, 0
        %v291 = vsel %vm283, %v257, 0
        %v294 = vsel %vm283, %v258, 0
        %vm296 = vcmask 1043456
        %v298 = vsel %vm296, %v254, 0
        %300 = vmatprep.subr.mxu0 0.0
        %301 = vmatpush1.msra.mxu0 0.0
        %302 = vmatprep.subr.mxu0 0.0
        %303 = vmatpush1.msra.mxu0 0.0
        %304 = vmatprep.subr.mxu0 0.0
        %305 = vmatpush1.msra.mxu0 0.0
        %306 = vmatprep.subr.mxu0 0.0
        %307 = vmatpush1.msra.mxu0 0.0
        %308 = vmatprep.subr.mxu0 0.0
        %309 = vmatpush1.msra.mxu0 0.0
        %310 = vmatprep.subr.mxu0 0.0
        %311 = vmatpush1.msra.mxu0 0.0
        %312 = vmatprep.subr.mxu0 0.0
        %313 = vmatpush1.msra.mxu0 0.0
        %314 = vmatprep.subr.mxu0 0.0
        %315 = vmatpush1.msra.mxu0 0.0
        %316 = vmatprep.subr.mxu0 0.0
        %317 = vmatpush1.msra.mxu0 0.0
        %318 = vmatprep.subr.mxu0 0.0
        %319 = vmatpush1.msra.mxu0 0.0
        %320 = vmatprep.subr.mxu0 0.0
        %321 = vmatpush1.msra.mxu0 0.0
        %322 = vmatprep.subr.mxu0 0.0
        %323 = vmatpush1.msra.mxu0 0.0
        %324 = vmatprep.subr.mxu0 0.0
        %325 = vmatpush1.msra.mxu0 0.0
        %326 = vmatprep.subr.mxu0 0.0
        %327 = vmatpush1.msra.mxu0 0.0
        %328 = vmatprep.subr.mxu0 0.0
        %329 = vmatpush1.msra.mxu0 0.0
        %330 = vmatprep.subr.mxu0 0.0
        %331 = vmatpush1.msra.mxu0 %v298
        %332 = vmatprep.subr.mxu0 0.0
        %333 = vmatpush2.msra.mxu0 0.0
        %334 = vmatprep.subr.mxu0 0.0
        %335 = vmatpush2.msra.mxu0 0.0
        %336 = vmatprep.subr.mxu0 0.0
        %337 = vmatpush2.msra.mxu0 0.0
        %338 = vmatprep.subr.mxu0 0.0
        %339 = vmatpush2.msra.mxu0 0.0
        %340 = vmatprep.subr.mxu0 0.0
        %341 = vmatpush2.msra.mxu0 0.0
        %342 = vmatprep.subr.mxu0 0.0
        %343 = vmatpush2.msra.mxu0 0.0
        %344 = vmatprep.subr.mxu0 0.0
        %345 = vmatpush2.msra.mxu0 0.0
        %346 = vmatprep.subr.mxu0 0.0
        %347 = vmatpush2.msra.mxu0 0.0
        %348 = vmatprep.subr.mxu0 0.0
        %349 = vmatpush2.msra.mxu0 0.0
        %350 = vmatprep.subr.mxu0 0.0
        %351 = vmatpush2.msra.mxu0 0.0
        %352 = vmatprep.subr.mxu0 0.0
        %353 = vmatpush2.msra.mxu0 0.0
        %354 = vmatprep.subr.mxu0 0.0
        %355 = vmatpush2.msra.mxu0 0.0
        %356 = vmatprep.subr.mxu0 0.0
        %357 = vmatpush2.msra.mxu0 0.0
        %358 = vmatprep.subr.mxu0 0.0
        %359 = vmatpush2.msra.mxu0 0.0
        %360 = vmatprep.subr.mxu0 0.0
        %361 = vmatpush2.msra.mxu0 0.0
        %362 = vmatprep.subr.mxu0 0.0
        %363 = vmatpush2.msra.mxu0 0.0
        %364 = vmatprep.mubr.f32.mxu0 0.0
        %365 = vmatmul.mubr.f32.gmra.mxu0 %v285
        %v366 = vpop.f32.mrf.mxu0
        %v367 = vadd.f32 %v266, %v366
        %v368 = vpop.f32.mrf.mxu0
        %369 = vmatprep.mubr.f32.mxu0 0.0
        %370 = vmatmul.mubr.f32.gmra.mxu0 %v288
        %v371 = vpop.f32.mrf.mxu0
        %v372 = vadd.f32 %v271, %v371
        %v373 = vpop.f32.mrf.mxu0
        %374 = vmatprep.mubr.f32.mxu0 0.0
        %375 = vmatmul.mubr.f32.gmra.mxu0 %v291
        %v376 = vpop.f32.mrf.mxu0
        %v377 = vadd.f32 %v276, %v376
        %v378 = vpop.f32.mrf.mxu0
        %379 = vmatprep.mubr.f32.mxu0 0.0
        %380 = vmatmul.mubr.f32.gmra.mxu0 %v294
        %v381 = vpop.f32.mrf.mxu0
        %v382 = vadd.f32 %v281, %v381
        %v383 = vpop.f32.mrf.mxu0
        %384 = vdwg.mxu0
        %v385 = vmax.f32 %v367, 0.0
        %v386 = vmax.f32 %v372, 0.0
        %v387 = vmax.f32 %v377, 0.0
        %v388 = vmax.f32 %v382, 0.0
        %v389 = vld [vmem:[#allocation2] sm:$0xff]
        %v390 = vld [vmem:[#allocation2 + $0x8] sm:$0xff]
        %v391 = vld [vmem:[#allocation2 + $0x10] sm:$0xff]
        %v392 = vld [vmem:[#allocation2 + $0x18] sm:$0xff]
        %393 = vadd.xlane.f32.xlu0 %v385
        %v394 = vpop.xlane.xlu0 %393
        %395 = vadd.xlane.f32.xlu0 %v386
        %v396 = vpop.xlane.xlu0 %395
        %397 = vadd.xlane.f32.xlu0 %v387
        %v398 = vpop.xlane.xlu0 %397
        %399 = vadd.xlane.f32.xlu0 %v388
        %v400 = vpop.xlane.xlu0 %399
        %v401 = vadd.f32 %v389, %v394
        %v402 = vadd.f32 %v390, %v396
        %v403 = vadd.f32 %v391, %v398
        %v404 = vadd.f32 %v392, %v400
        %vm405 = vcmask 7168
        %406 = vst.msk [vmem:[#allocation2] sm:$0xff] %vm405, %v401
        %407 = vst.msk [vmem:[#allocation2 + $0x8] sm:$0xff] %vm405, %v402
        %408 = vst.msk [vmem:[#allocation2 + $0x10] sm:$0xff] %vm405, %v403
        %409 = vst.msk [vmem:[#allocation2 + $0x18] sm:$0xff] %vm405, %v404
        %p410 = scmp.eq.s32.totalorder %s24, 1
        // Predicated region
        $region45: #{tpu_custom_call.1} parent=39 // pred_check
          %p411 = pneg %p410
        $region46: #{tpu_custom_call.1} parent=39 // pred_check_branch
          %413 = sbr.rel (%p411) target = $region48
        $region47: #{tpu_custom_call.1} parent=39 // pred_region
          %v414 = vld [vmem:[#allocation2] sm:$0xff]
          %v415 = vld [vmem:[#allocation2 + $0x8] sm:$0xff]
          %v416 = vld [vmem:[#allocation2 + $0x10] sm:$0xff]
          %v417 = vld [vmem:[#allocation2 + $0x18] sm:$0xff]
          %v418 = vmul.f32 %v414, 0.00390625
          %v419 = vmul.f32 %v415, 0.00390625
          %v420 = vmul.f32 %v416, 0.00390625
          %v421 = vmul.f32 %v417, 0.00390625
          %v422 = vld [vmem:[%s3] sm:$0xff]
          %v423 = vld [vmem:[%s3 + $0x8] sm:$0xff]
          %v424 = vld [vmem:[%s3 + $0x10] sm:$0xff]
          %v425 = vld [vmem:[%s3 + $0x18] sm:$0xff]
          %v426 = vld [vmem:[%s4] sm:$0x1]
          %427 = vxpose.xlu0.b32.start [1/16] %v418, 128
          %428 = vxpose.xlu0.b32.cont [2/16] %v419, 128
          %429 = vxpose.xlu0.b32.cont [3/16] %v420, 128
          %430 = vxpose.xlu0.b32.cont [4/16] %v421, 128
          %431 = vxpose.xlu0.b32.cont [5/16] 0.0, 128
          %432 = vxpose.xlu0.b32.cont [6/16] 0.0, 128
          %433 = vxpose.xlu0.b32.cont [7/16] 0.0, 128
          %434 = vxpose.xlu0.b32.cont [8/16] 0.0, 128
          %435 = vxpose.xlu0.b32.cont [9/16] 0.0, 128
          %436 = vxpose.xlu0.b32.cont [10/16] 0.0, 128
          %437 = vxpose.xlu0.b32.cont [11/16] 0.0, 128
          %438 = vxpose.xlu0.b32.cont [12/16] 0.0, 128
          %439 = vxpose.xlu0.b32.cont [13/16] 0.0, 128
          %440 = vxpose.xlu0.b32.cont [14/16] 0.0, 128
          %441 = vxpose.xlu0.b32.cont [15/16] 0.0, 128
          %442 = vxpose.xlu0.b32.end [16/16] 0.0, 128
          %v443 = vpop.trf.xlu0
          %v444 = vpop.trf.xlu0
          %v445 = vpop.trf.xlu0
          %v446 = vpop.trf.xlu0
          %v447 = vpop.trf.xlu0
          %v448 = vpop.trf.xlu0
          %v449 = vpop.trf.xlu0
          %v450 = vpop.trf.xlu0
          %v451 = vpop.trf.xlu0
          %v452 = vpop.trf.xlu0
          %v453 = vpop.trf.xlu0
          %v454 = vpop.trf.xlu0
          %v455 = vpop.trf.xlu0
          %v456 = vpop.trf.xlu0
          %v457 = vpop.trf.xlu0
          %v458 = vpop.trf.xlu0
          %vm459 = vcmask 261120
          %v461 = vsel %vm459, %v443, 0
          %463 = vmatprep.subr.mxu0 0.0
          %464 = vmatpush1.msra.mxu0 0.0
          %465 = vmatprep.subr.mxu0 0.0
          %466 = vmatpush1.msra.mxu0 0.0
          %467 = vmatprep.subr.mxu0 0.0
          %468 = vmatpush1.msra.mxu0 0.0
          %469 = vmatprep.subr.mxu0 0.0
          %470 = vmatpush1.msra.mxu0 0.0
          %471 = vmatprep.subr.mxu0 0.0
          %472 = vmatpush1.msra.mxu0 0.0
          %473 = vmatprep.subr.mxu0 0.0
          %474 = vmatpush1.msra.mxu0 0.0
          %475 = vmatprep.subr.mxu0 0.0
          %476 = vmatpush1.msra.mxu0 0.0
          %477 = vmatprep.subr.mxu0 0.0
          %478 = vmatpush1.msra.mxu0 0.0
          %479 = vmatprep.subr.mxu0 0.0
          %480 = vmatpush1.msra.mxu0 0.0
          %481 = vmatprep.subr.mxu0 0.0
          %482 = vmatpush1.msra.mxu0 0.0
          %483 = vmatprep.subr.mxu0 0.0
          %484 = vmatpush1.msra.mxu0 0.0
          %485 = vmatprep.subr.mxu0 0.0
          %486 = vmatpush1.msra.mxu0 0.0
          %487 = vmatprep.subr.mxu0 0.0
          %488 = vmatpush1.msra.mxu0 %v425
          %489 = vmatprep.subr.mxu0 0.0
          %490 = vmatpush1.msra.mxu0 %v424
          %491 = vmatprep.subr.mxu0 0.0
          %492 = vmatpush1.msra.mxu0 %v423
          %493 = vmatprep.subr.mxu0 0.0
          %494 = vmatpush1.msra.mxu0 %v422
          %495 = vmatprep.subr.mxu0 0.0
          %496 = vmatpush2.msra.mxu0 0.0
          %497 = vmatprep.subr.mxu0 0.0
          %498 = vmatpush2.msra.mxu0 0.0
          %499 = vmatprep.subr.mxu0 0.0
          %500 = vmatpush2.msra.mxu0 0.0
          %501 = vmatprep.subr.mxu0 0.0
          %502 = vmatpush2.msra.mxu0 0.0
          %503 = vmatprep.subr.mxu0 0.0
          %504 = vmatpush2.msra.mxu0 0.0
          %505 = vmatprep.subr.mxu0 0.0
          %506 = vmatpush2.msra.mxu0 0.0
          %507 = vmatprep.subr.mxu0 0.0
          %508 = vmatpush2.msra.mxu0 0.0
          %509 = vmatprep.subr.mxu0 0.0
          %510 = vmatpush2.msra.mxu0 0.0
          %511 = vmatprep.subr.mxu0 0.0
          %512 = vmatpush2.msra.mxu0 0.0
          %513 = vmatprep.subr.mxu0 0.0
          %514 = vmatpush2.msra.mxu0 0.0
          %515 = vmatprep.subr.mxu0 0.0
          %516 = vmatpush2.msra.mxu0 0.0
          %517 = vmatprep.subr.mxu0 0.0
          %518 = vmatpush2.msra.mxu0 0.0
          %519 = vmatprep.subr.mxu0 0.0
          %520 = vmatpush2.msra.mxu0 0.0
          %521 = vmatprep.subr.mxu0 0.0
          %522 = vmatpush2.msra.mxu0 0.0
          %523 = vmatprep.subr.mxu0 0.0
          %524 = vmatpush2.msra.mxu0 0.0
          %525 = vmatprep.subr.mxu0 0.0
          %526 = vmatpush2.msra.mxu0 0.0
          %527 = vmatprep.mubr.f32.mxu0 0.0
          %528 = vmatmul.mubr.f32.gmra.mxu0 %v461
          %v529 = vpop.f32.mrf.mxu0
          %v530 = vadd.f32 %v426, %v529
          %v531 = vpop.f32.mrf.mxu0
          %532 = vdwg.mxu0
          %533 = vst [vmem:[%s236] sm:$0x1] %v530
        $region48: #{tpu_custom_call.1} parent=39 // pred_fallthru
          _
        %s534 = sand.u32 %s151, 1
        %s535 = scalar_lea.sflag [#allocation4], %s534
        %s536 = sand.u32 %s151, 1
        %s537 = scalar_lea.vmem [#allocation3], %s536
        // Predicated region
        $region49: #{tpu_custom_call.1} parent=39 // pred_check
          %p538 = pneg %p161
        $region50: #{tpu_custom_call.1} parent=39 // pred_check_branch
          %540 = sbr.rel (%p538) target = $region52
        $region51: #{tpu_custom_call.1} parent=39 // pred_region
          %s542 = ssub.s32 16, 16
          %543 = vsyncadd %s535, %s542
          %s544 = smul.addr %s23, 16
          %s545 = scalar_lea.hbm %s5, %s544
          %s547 = sshll.u32 %s537, 4
          %s548 = int_to_ptr.vmem [resolvable:$true] %s547
          %550 = dma.vmem_to_hbm [thread:$0]  %s548, 16, %s545, %s535
        $region52: #{tpu_custom_call.1} parent=39 // pred_fallthru
          _
      $region40: #{tpu_custom_call.1} parent=5 // pred_fallthru
        _
      %p551 = scmp.le.s32.totalorder 2, %s14
      // Predicated region
      $region53: #{tpu_custom_call.1} parent=5 // pred_check
        %p552 = pneg %p551
      $region54: #{tpu_custom_call.1} parent=5 // pred_check_branch
        %554 = sbr.rel (%p552) target = $region56
      $region55: #{tpu_custom_call.1} parent=5 // pred_region
        %s555 = ssub.s32 %s14, 2
        // Predicated region
        $region57: #{tpu_custom_call.1} parent=55 // pred_check
          %p556 = pneg %p167
        $region58: #{tpu_custom_call.1} parent=55 // pred_check_branch
          %558 = sbr.rel (%p556) target = $region60
        $region59: #{tpu_custom_call.1} parent=55 // pred_region
          %s559 = sand.u32 %s152, 1
          %s560 = scalar_lea.sflag [#allocation4], %s559
          %s561 = sand.u32 %s152, 1
          %s562 = scalar_lea.vmem [#allocation3], %s561
          %563 = dma.done %s560, 16
        $region60: #{tpu_custom_call.1} parent=55 // pred_fallthru
          _
      $region56: #{tpu_custom_call.1} parent=5 // pred_fallthru
        _
    $region6: #{tpu_custom_call.1} parent=1 // loop_footer
      %s18 = sadd.s32 1, %s14
    $region7: #{tpu_custom_call.1} parent=1 // loop_footer_branch
      %13 = sbr.rel target = $region3
    $region8: #{tpu_custom_call.1} parent=1 // loop_exit
      _
    %564 = vsyncpa [#allocation4], 1
    %s565 = scalar_lea.sflag [#allocation4], 1
    %566 = vsyncpa %s565, 1

</llo_original>
